<compile_context>
chip_gen: v6e
topology: v6e:2x2x1
jax: 0.10.0
libtpu: 0.0.40
codegen_flags: <defaults>
</compile_context>

<pallas_src>
import functools

import jax
import jax.numpy as jnp
from jax.experimental import pallas as pl
from jax.experimental.pallas import tpu as pltpu


def _round_up(x, m):
    return ((x + m - 1) // m) * m


def trainable_head_kernel(x_ref, w_ref, b_ref, o_ref, *, penalty):
    # x_ref : (tm, n_rl)    f32 input tile (also the residual)
    # w_ref : (n_rl, n_rl)  f32 folded weight  W_anti @ W_lm @ W_pool
    # b_ref : (1, n_rl)     f32 folded bias    b_anti @ W_lm @ W_pool + b_pool
    # o_ref : (tm, n_rl)    f32 output tile
    x = x_ref[...]
    z = jnp.dot(x, w_ref[...], preferred_element_type=jnp.float32) + b_ref[...]
    z = z - jnp.max(z, axis=-1, keepdims=True)
    e = jnp.exp(z)
    inv = pl.reciprocal(jnp.sum(e, axis=-1, keepdims=True), approx=True)
    o_ref[...] = (penalty * (e * inv) + x).astype(o_ref.dtype)


def trainable_head_forward(x_input, w_anti, b_anti, w_lm, w_pool, b_pool, *,
                           penalty=0.01, tm=512):
    """Non-llama TrainableHead forward.

    x_input: [batch, n_rl]; softmax over the last (class) axis, matching
    Softmax(dim=1) for 2-D inputs.
    Weights are stored transposed vs PyTorch, i.e. [in, out]:
      w_anti [n_rl, n_embd], w_lm [n_embd, vocab], w_pool [vocab, n_rl].
    """
    orig_shape = x_input.shape
    orig_dtype = x_input.dtype
    n_rl = orig_shape[-1]

    f32 = jnp.float32
    # --- Fold the whole linear chain once, in f32 (exact, tiny vs. M*V work) ---
    C = jnp.dot(w_lm.astype(f32), w_pool.astype(f32))            # [n_embd, n_rl]
    w_total = jnp.dot(w_anti.astype(f32), C)                     # [n_rl,   n_rl]
    b_total = (jnp.dot(b_anti.astype(f32).reshape(1, -1), C)
               + b_pool.astype(f32).reshape(1, -1))              # [1,      n_rl]

    x2d = x_input.reshape(-1, n_rl).astype(f32)
    M = x2d.shape[0]

    # Token tile: multiple of 8; keep >= 2 tiles when M >= 16 so v7x's two
    # TensorCores (and megacore on v5e/v6e) both get work.
    if M >= 16:
        tm = min(tm, _round_up(-(-M // 2), 8))
    else:
        tm = min(tm, _round_up(M, 8))
    tm = max(tm, 8)

    M_pad = _round_up(M, tm)
    if M_pad != M:
        x2d = jnp.pad(x2d, ((0, M_pad - M), (0, 0)))   # padded rows sliced off below

    grid = (M_pad // tm,)

    flops = 2 * M_pad * n_rl * n_rl + 6 * M_pad * n_rl
    bytes_accessed = int(2 * M_pad * n_rl * 4 + (n_rl * n_rl + n_rl) * 4)

    kernel = functools.partial(trainable_head_kernel, penalty=float(penalty))

    out2d = pl.pallas_call(
        kernel,
        out_shape=jax.ShapeDtypeStruct((M_pad, n_rl), jnp.float32),
        grid_spec=pltpu.PrefetchScalarGridSpec(
            num_scalar_prefetch=0,
            grid=grid,
            in_specs=[
                pl.BlockSpec((tm, n_rl), lambda i: (i, 0)),      # x tile
                pl.BlockSpec((n_rl, n_rl), lambda i: (0, 0)),    # folded weight
                pl.BlockSpec((1, n_rl), lambda i: (0, 0)),       # folded bias
            ],
            out_specs=pl.BlockSpec((tm, n_rl), lambda i: (i, 0)),
        ),
        compiler_params=pltpu.CompilerParams(
            dimension_semantics=("parallel",),
            vmem_limit_bytes=32 * 1024 * 1024),
        cost_estimate=pl.CostEstimate(
            flops=flops,
            transcendentals=M_pad * (n_rl + 1),
            bytes_accessed=bytes_accessed),
    )(x2d, w_total, b_total)

    return out2d[:M].astype(orig_dtype).reshape(orig_shape)


def init_params(key, n_rl, n_embd, vocab_size):
    """PyTorch nn.Linear-style init; weights stored as [in, out]."""
    k1, k2, k3, k4, k5 = jax.random.split(key, 5)
    lim_a = 1.0 / jnp.sqrt(n_rl)         # anti_pool: Linear(n_rl, n_embd)
    lim_l = 1.0 / jnp.sqrt(n_embd)       # lm_head : Linear(n_embd, vocab) no bias
    lim_p = 1.0 / jnp.sqrt(vocab_size)   # pool    : Linear(vocab, n_rl)
    w_anti = jax.random.uniform(k1, (n_rl, n_embd), jnp.float32, -lim_a, lim_a)
    b_anti = jax.random.uniform(k2, (n_embd,), jnp.float32, -lim_a, lim_a)
    w_lm = jax.random.uniform(k3, (n_embd, vocab_size), jnp.float32, -lim_l, lim_l)
    w_pool = jax.random.uniform(k4, (vocab_size, n_rl), jnp.float32, -lim_p, lim_p)
    b_pool = jax.random.uniform(k5, (n_rl,), jnp.float32, -lim_p, lim_p)
    return w_anti, b_anti, w_lm, w_pool, b_pool


if __name__ == "__main__":
    key = jax.random.PRNGKey(0)
    kx, kp = jax.random.split(key)

    batch, n_rl, n_embd, vocab_size = 8, 3, 32, 256
    penalty = 0.01

    x = jax.random.normal(kx, (batch, n_rl), dtype=jnp.float32)
    w_anti, b_anti, w_lm, w_pool, b_pool = init_params(kp, n_rl, n_embd, vocab_size)

    out = trainable_head_forward(x, w_anti, b_anti, w_lm, w_pool, b_pool,
                                 penalty=penalty)
    out = jax.block_until_ready(out)

    # Plain-JAX f32 reference of the unfused PyTorch forward.
    h = jnp.dot(x, w_anti) + b_anti
    logits = jnp.dot(h, w_lm)
    z = jnp.dot(logits, w_pool) + b_pool
    ref = penalty * jax.nn.softmax(z, axis=-1) + x

    assert out.shape == x.shape
    max_err = float(jnp.max(jnp.abs(out - ref)))
    assert jnp.allclose(out, ref, atol=1e-4, rtol=1e-4), max_err

    print("KERNEL_OK")
</pallas_src>

<mosaic_0001>
module attributes {stable_mosaic.version = 11 : i64} {
  func.func @trainable_head_kernel(%arg0: i32, %arg1: memref<8x3xf32, #tpu.memory_space<vmem>>, %arg2: memref<3x3xf32, #tpu.memory_space<vmem>>, %arg3: memref<1x3xf32, #tpu.memory_space<vmem>>, %arg4: memref<8x3xf32, #tpu.memory_space<vmem>>) attributes {dimension_semantics = [#tpu.dimension_semantics<parallel>], iteration_bounds = array<i64: 1>, scalar_prefetch = 0 : i64, scratch_operands = 0 : i64, tpu.core_type = #tpu.core_type<tc>, window_params = [{transform_indices = @transform_0, window_bounds = array<i64: 8, 3>}, {pipeline_mode = #tpu.pipeline_mode<synchronous>, transform_indices = @transform_1, window_bounds = array<i64: 3, 3>}, {pipeline_mode = #tpu.pipeline_mode<synchronous>, transform_indices = @transform_2, window_bounds = array<i64: 1, 3>}, {transform_indices = @transform_3, window_bounds = array<i64: 8, 3>}]} {
    %c0 = arith.constant 0 : index
    %c0_0 = arith.constant 0 : index
    %0 = vector.load %arg1[%c0, %c0_0] : memref<8x3xf32, #tpu.memory_space<vmem>>, vector<8x3xf32>
    %c0_1 = arith.constant 0 : index
    %c0_2 = arith.constant 0 : index
    %1 = vector.load %arg2[%c0_1, %c0_2] : memref<3x3xf32, #tpu.memory_space<vmem>>, vector<3x3xf32>
    %cst = arith.constant dense<0.000000e+00> : vector<8x3xf32>
    %2 = tpu.matmul %0, %1, %cst {dimension_numbers = #tpu.dot_dimension_numbers<[1], [0], [0], [1], [0, 0, 1, 1], [], []>} : vector<8x3xf32>, vector<3x3xf32>, vector<8x3xf32> -> vector<8x3xf32>
    %c0_3 = arith.constant 0 : index
    %c0_4 = arith.constant 0 : index
    %3 = vector.load %arg3[%c0_3, %c0_4] : memref<1x3xf32, #tpu.memory_space<vmem>>, vector<1x3xf32>
    %4 = vector.broadcast %3 : vector<1x3xf32> to vector<8x3xf32>
    %5 = arith.addf %2, %4 : vector<8x3xf32>
    %cst_5 = arith.constant dense<0xFF800000> : vector<8xf32>
    %6 = vector.multi_reduction <maximumf>, %5, %cst_5 [1] : vector<8x3xf32> to vector<8xf32>
    %7 = vector.shape_cast %6 : vector<8xf32> to vector<8x1xf32>
    %8 = vector.broadcast %7 : vector<8x1xf32> to vector<8x3xf32>
    %9 = arith.subf %5, %8 : vector<8x3xf32>
    %10 = math.exp %9 : vector<8x3xf32>
    %cst_6 = arith.constant dense<0.000000e+00> : vector<8xf32>
    %11 = vector.multi_reduction <add>, %10, %cst_6 [1] : vector<8x3xf32> to vector<8xf32>
    %12 = vector.shape_cast %11 : vector<8xf32> to vector<8x1xf32>
    %13 = tpu.reciprocal %12 {approx = true} : vector<8x1xf32> -> vector<8x1xf32>
    %14 = vector.broadcast %13 : vector<8x1xf32> to vector<8x3xf32>
    %15 = arith.mulf %10, %14 : vector<8x3xf32>
    %cst_7 = arith.constant 0.00999999977 : f32
    %16 = vector.broadcast %cst_7 : f32 to vector<8x3xf32>
    %17 = arith.mulf %16, %15 : vector<8x3xf32>
    %18 = arith.addf %17, %0 : vector<8x3xf32>
    %c0_8 = arith.constant 0 : index
    %c0_9 = arith.constant 0 : index
    %19 = vector.load %arg4[%c0_8, %c0_9] : memref<8x3xf32, #tpu.memory_space<vmem>>, vector<8x3xf32>
    tpu.vector_store %arg4[%c0_8, %c0_9], %18 {strides = array<i32>} : memref<8x3xf32, #tpu.memory_space<vmem>>, vector<8x3xf32>,
    return
  }
  func.func @transform_0(%arg0: i32) -> (i32, i32) {
    %c0_i32 = arith.constant 0 : i32
    %c0_i32_0 = arith.constant 0 : i32
    return %arg0, %c0_i32 : i32, i32
  }
  func.func @transform_1(%arg0: i32) -> (i32, i32) {
    %c0_i32 = arith.constant 0 : i32
    %c0_i32_0 = arith.constant 0 : i32
    %c0_i32_1 = arith.constant 0 : i32
    return %c0_i32, %c0_i32_0 : i32, i32
  }
  func.func @transform_2(%arg0: i32) -> (i32, i32) {
    %c0_i32 = arith.constant 0 : i32
    %c0_i32_0 = arith.constant 0 : i32
    %c0_i32_1 = arith.constant 0 : i32
    return %c0_i32, %c0_i32_0 : i32, i32
  }
  func.func @transform_3(%arg0: i32) -> (i32, i32) {
    %c0_i32 = arith.constant 0 : i32
    %c0_i32_0 = arith.constant 0 : i32
    return %arg0, %c0_i32 : i32, i32
  }
}

</mosaic_0001>

<llo_original>
// kernel: tpu_custom_call.1
$region0: #{tpu_custom_call.1}
  #allocation0 [shape = 'u32[]', space=smem, size = 0x4, offset = 0x4, fixed_abs, tag = 'smem constant byte address 0x4 - core index']
  #allocation1 [shape = 'u32[144,128]{1,0:T(1,128)}', space=vmem, size = 0x12000, scoped, tag = 'internal scratch']
  %s0 = inlined_call_operand.vmem [shape: f32[8,3], index: 0, kind: input, shape index: {}]
  %s1 = inlined_call_operand.vmem [shape: f32[3,3], index: 1, kind: input, shape index: {}]
  %s2 = inlined_call_operand.vmem [shape: f32[1,3], index: 2, kind: input, shape index: {}]
  %s3 = inlined_call_operand.vmem [shape: f32[8,3], index: 3, kind: output, shape index: {}]
  %s4 = sld [smem:[#allocation0]]
  $region22: #{tpu_custom_call.1} parent=0
    _
  %s6 = ssub.s32 1, %s4
  %s7 = scalar_select 0, %s6, %s4
  // Predicated region
  $region2: #{tpu_custom_call.1} parent=0 // pred_check
    _
  $region3: #{tpu_custom_call.1} parent=0 // pred_check_branch
    %9 = sbr.rel (0) target = $region5
  $region4: #{tpu_custom_call.1} parent=0 // pred_region
    _
  $region5: #{tpu_custom_call.1} parent=0 // pred_fallthru
    _
  // Predicated region
  $region6: #{tpu_custom_call.1} parent=0 // pred_check
    _
  $region7: #{tpu_custom_call.1} parent=0 // pred_check_branch
    %11 = sbr.rel (0) target = $region9
  $region8: #{tpu_custom_call.1} parent=0 // pred_region
    _
  $region9: #{tpu_custom_call.1} parent=0 // pred_fallthru
    _
  // Predicated region
  $region10: #{tpu_custom_call.1} parent=0 // pred_check
    _
  $region11: #{tpu_custom_call.1} parent=0 // pred_check_branch
    %13 = sbr.rel (0) target = $region13
  $region12: #{tpu_custom_call.1} parent=0 // pred_region
    _
  $region13: #{tpu_custom_call.1} parent=0 // pred_fallthru
    _
  %v14 = vld [vmem:[%s0] sm:$0xff]
  %v15 = vld [vmem:[%s1] sm:$0x7]
  %v16 = vld [vmem:[%s2] sm:$0x1]
  %v18 = vlaneseq
  %v19 = vshrl.u32 %v18, 7
  %v20 = vsub.s32 0, %v19
  %v21 = vrot.slane %v16, %v20
  %vm23 = vcmask 23552
  %v25 = vsel %vm23, %v14, 0
  %vm27 = vcmask 1042432
  %v29 = vsel %vm27, %v15, 0
  %31 = vmatprep.subr.mxu0 0.0
  %32 = vmatpush1.msra.mxu0 0.0
  %33 = vmatprep.subr.mxu0 0.0
  %34 = vmatpush1.msra.mxu0 0.0
  %35 = vmatprep.subr.mxu0 0.0
  %36 = vmatpush1.msra.mxu0 0.0
  %37 = vmatprep.subr.mxu0 0.0
  %38 = vmatpush1.msra.mxu0 0.0
  %39 = vmatprep.subr.mxu0 0.0
  %40 = vmatpush1.msra.mxu0 0.0
  %41 = vmatprep.subr.mxu0 0.0
  %42 = vmatpush1.msra.mxu0 0.0
  %43 = vmatprep.subr.mxu0 0.0
  %44 = vmatpush1.msra.mxu0 0.0
  %45 = vmatprep.subr.mxu0 0.0
  %46 = vmatpush1.msra.mxu0 0.0
  %47 = vmatprep.subr.mxu0 0.0
  %48 = vmatpush1.msra.mxu0 0.0
  %49 = vmatprep.subr.mxu0 0.0
  %50 = vmatpush1.msra.mxu0 0.0
  %51 = vmatprep.subr.mxu0 0.0
  %52 = vmatpush1.msra.mxu0 0.0
  %53 = vmatprep.subr.mxu0 0.0
  %54 = vmatpush1.msra.mxu0 0.0
  %55 = vmatprep.subr.mxu0 0.0
  %56 = vmatpush1.msra.mxu0 0.0
  %57 = vmatprep.subr.mxu0 0.0
  %58 = vmatpush1.msra.mxu0 0.0
  %59 = vmatprep.subr.mxu0 0.0
  %60 = vmatpush1.msra.mxu0 0.0
  %61 = vmatprep.subr.mxu0 0.0
  %62 = vmatpush1.msra.mxu0 %v29
  %63 = vmatprep.subr.mxu0 0.0
  %64 = vmatpush2.msra.mxu0 0.0
  %65 = vmatprep.subr.mxu0 0.0
  %66 = vmatpush2.msra.mxu0 0.0
  %67 = vmatprep.subr.mxu0 0.0
  %68 = vmatpush2.msra.mxu0 0.0
  %69 = vmatprep.subr.mxu0 0.0
  %70 = vmatpush2.msra.mxu0 0.0
  %71 = vmatprep.subr.mxu0 0.0
  %72 = vmatpush2.msra.mxu0 0.0
  %73 = vmatprep.subr.mxu0 0.0
  %74 = vmatpush2.msra.mxu0 0.0
  %75 = vmatprep.subr.mxu0 0.0
  %76 = vmatpush2.msra.mxu0 0.0
  %77 = vmatprep.subr.mxu0 0.0
  %78 = vmatpush2.msra.mxu0 0.0
  %79 = vmatprep.subr.mxu0 0.0
  %80 = vmatpush2.msra.mxu0 0.0
  %81 = vmatprep.subr.mxu0 0.0
  %82 = vmatpush2.msra.mxu0 0.0
  %83 = vmatprep.subr.mxu0 0.0
  %84 = vmatpush2.msra.mxu0 0.0
  %85 = vmatprep.subr.mxu0 0.0
  %86 = vmatpush2.msra.mxu0 0.0
  %87 = vmatprep.subr.mxu0 0.0
  %88 = vmatpush2.msra.mxu0 0.0
  %89 = vmatprep.subr.mxu0 0.0
  %90 = vmatpush2.msra.mxu0 0.0
  %91 = vmatprep.subr.mxu0 0.0
  %92 = vmatpush2.msra.mxu0 0.0
  %93 = vmatprep.subr.mxu0 0.0
  %94 = vmatpush2.msra.mxu0 0.0
  %95 = vmatprep.mubr.f32.mxu0 0.0
  %96 = vmatmul.mubr.f32.gmra.mxu0 %v25
  %v97 = vpop.f32.mrf.mxu0
  %v98 = vadd.f32 %v21, %v97
  %v99 = vpop.f32.mrf.mxu0
  %100 = vdwg.mxu0
  %v101 = vsel %vm23, %v98, -inf
  %102 = vmax.xlane.f32.xlu0 %v101
  %v103 = vpop.xlane.xlu0 %102
  %v104 = vsub.f32 %v98, %v103
  %v105 = vmul.f32 %v104, 1.442695
  %v106 = vpow.pop %v105
  %v107 = vsel %vm23, %v106, 0.0
  %108 = vadd.xlane.f32.xlu0 %v107
  %v109 = vpop.xlane.xlu0 %108
  %v110 = vrcp.pop %v109
  %v111 = vmul.f32 %v106, %v110
  %v112 = vmul.f32 %v111, 0.01
  %v113 = vadd.f32 %v112, %v14
  %114 = vst.msk [vmem:[%s3] sm:$0xff] %vm23, %v113
  // Predicated region
  $region14: #{tpu_custom_call.1} parent=0 // pred_check
    _
  $region15: #{tpu_custom_call.1} parent=0 // pred_check_branch
    %116 = sbr.rel (0) target = $region17
  $region16: #{tpu_custom_call.1} parent=0 // pred_region
    _
  $region17: #{tpu_custom_call.1} parent=0 // pred_fallthru
    _
  // Predicated region
  $region18: #{tpu_custom_call.1} parent=0 // pred_check
    _
  $region19: #{tpu_custom_call.1} parent=0 // pred_check_branch
    %118 = sbr.rel (0) target = $region21
  $region20: #{tpu_custom_call.1} parent=0 // pred_region
    _
  $region21: #{tpu_custom_call.1} parent=0 // pred_fallthru
    _

</llo_original>
